<compile_context>
chip_gen: v7x
topology: tpu7x:2x2x1
jax: 0.10.0
libtpu: 0.0.40
codegen_flags: <defaults>
</compile_context>

<pallas_src>
import functools

import jax
import jax.numpy as jnp
from jax.experimental import pallas as pl
from jax.experimental.pallas import tpu as pltpu


# ---------------------------------------------------------------------------
# In-kernel math helpers
# ---------------------------------------------------------------------------
def _static_pow(base, gamma):
    """base ** gamma with integer gamma special-cased to multiplies (VPU only)."""
    g = float(gamma)
    gi = int(round(g))
    if abs(g - gi) < 1e-12 and 0 <= gi <= 16:
        if gi == 0:
            return jnp.ones_like(base)
        result = None
        b = base
        n = gi
        while n:
            if n & 1:
                result = b if result is None else result * b
            n >>= 1
            if n:
                b = b * b
        return result
    return base ** jnp.float32(g)


def _focal_weight(x, e, gamma):
    """(1 - clamp(sigmoid(x)))**gamma, sharing exp(-|x|) = e with the BCE term."""
    inv = 1.0 / (1.0 + e)
    probs = jnp.where(x >= 0.0, inv, e * inv)          # stable sigmoid(x)
    probs = jnp.clip(probs, 1e-9, 1.0 - 1e-9)
    return _static_pow(1.0 - probs, gamma)


def _bce_with_logits(x, t, e):
    """Stable BCE-with-logits: max(x,0) - x*t + log1p(exp(-|x|))."""
    return jnp.maximum(x, 0.0) - x * t + jnp.log1p(e)


# ---------------------------------------------------------------------------
# Kernels (specialized per reduction mode)
# ---------------------------------------------------------------------------
def _focal_none_kernel(x_ref, t_ref, out_ref, *, gamma):
    """reduction='none': out = focal_weight * elementwise BCE."""
    x = x_ref[...].astype(jnp.float32)
    t = t_ref[...].astype(jnp.float32)
    e = jnp.exp(-jnp.abs(x))                            # one EUP exp per element
    fw = _focal_weight(x, e, gamma)
    bce = _bce_with_logits(x, t, e)
    out_ref[...] = (fw * bce).astype(out_ref.dtype)


def _bce_partial_kernel(x_ref, t_ref, part_ref, *, n_rows):
    """Pass 1 of 'sum'/'mean': per-block scalar BCE partial (no focal weight)."""
    x = x_ref[...].astype(jnp.float32)
    t = t_ref[...].astype(jnp.float32)
    e = jnp.exp(-jnp.abs(x))
    bce = _bce_with_logits(x, t, e)
    tm = x.shape[0]
    if n_rows % tm != 0:
        # Last block is ragged: rows beyond n_rows hold garbage -> mask to 0.
        row = pl.program_id(0) * tm + jax.lax.broadcasted_iota(
            jnp.int32, bce.shape, 0)
        bce = jnp.where(row < n_rows, bce, 0.0)
    part_ref[...] = jnp.full(part_ref.shape, jnp.sum(bce), jnp.float32)


def _focal_scale_kernel(ce_ref, x_ref, out_ref, *, gamma):
    """Pass 2 of 'sum'/'mean': out = focal_weight * scalar CE (CE from SMEM)."""
    ce = ce_ref[0, 0]                                   # f32 scalar in SMEM
    x = x_ref[...].astype(jnp.float32)
    e = jnp.exp(-jnp.abs(x))
    fw = _focal_weight(x, e, gamma)
    out_ref[...] = (fw * ce).astype(out_ref.dtype)


# ---------------------------------------------------------------------------
# Tiling helpers
# ---------------------------------------------------------------------------
def _round_up(v, m):
    return ((v + m - 1) // m) * m


def _choose_tm(n_rows, c_lanes, in_itemsize, out_itemsize, budget_bytes=13 << 20):
    """Row-tile choice: biggest multiple-of-8 tile whose double-buffered I/O
    tiles (native dtype) plus ~8 live f32 temporaries fit the VMEM budget;
    kept <=1024 rows, >=2 blocks when possible (v7x megacore), and rebalanced
    so the last block is not mostly padding."""
    per_row = (2 * 2 * in_itemsize + 2 * out_itemsize + 8 * 4) * c_lanes
    tm = max(8, min(1024, (budget_bytes // max(per_row, 1)) // 8 * 8))
    if n_rows <= 8:
        return n_rows                       # single full-dim block
    if tm >= n_rows:
        tm = max(8, _round_up(pl.cdiv(n_rows, 2), 8))   # keep >= 2 blocks
    nblocks = pl.cdiv(n_rows, tm)
    return _round_up(pl.cdiv(n_rows, nblocks), 8)       # even out the blocks


# ---------------------------------------------------------------------------
# Wrapper
# ---------------------------------------------------------------------------
def focal_loss(inputs, targets, *, gamma=2.0, reduction="none", pos_weight=None):
    """Pallas focal loss. inputs/targets: (N, C). Matches the torch module."""
    if pos_weight is not None:
        # TODO(synk): pos_weight branch of BCEWithLogitsLoss not implemented.
        raise NotImplementedError("pos_weight is not supported")
    N, C = inputs.shape
    assert targets.shape == (N, C)

    in_isz = jnp.dtype(inputs.dtype).itemsize
    c_lanes = _round_up(C, 128)             # lane-padded VMEM footprint per row
    tm = _choose_tm(N, c_lanes, in_isz, in_isz)
    nblocks = pl.cdiv(N, tm)
    grid = (nblocks,)

    # Minor block dim == full C (allowed for any C); no pads, no slices.
    tile_spec = pl.BlockSpec((tm, C), lambda i: (i, 0))
    cparams = pltpu.CompilerParams(
        dimension_semantics=("parallel",), vmem_limit_bytes=32 << 20)

    if reduction == "none":
        return pl.pallas_call(
            functools.partial(_focal_none_kernel, gamma=float(gamma)),
            out_shape=jax.ShapeDtypeStruct((N, C), inputs.dtype),
            grid=grid,
            in_specs=[tile_spec, tile_spec],
            out_specs=tile_spec,
            compiler_params=cparams,
            cost_estimate=pl.CostEstimate(
                flops=12 * N * C, transcendentals=3 * N * C,
                bytes_accessed=3 * N * C * in_isz),
        )(inputs, targets)

    if reduction not in ("sum", "mean"):
        raise ValueError(f"unsupported reduction: {reduction}")

    # Pass 1: per-block BCE partial sums only (no (N, C) focal-weight output).
    partials = pl.pallas_call(
        functools.partial(_bce_partial_kernel, n_rows=N),
        out_shape=jax.ShapeDtypeStruct((nblocks, 1, 128), jnp.float32),
        grid=grid,
        in_specs=[tile_spec, tile_spec],
        out_specs=pl.BlockSpec((1, 1, 128), lambda i: (i, 0, 0)),
        compiler_params=cparams,
        cost_estimate=pl.CostEstimate(
            flops=9 * N * C, transcendentals=2 * N * C,
            bytes_accessed=2 * N * C * in_isz),
    )(inputs, targets)

    bce_sum = jnp.sum(partials[:, 0, 0])
    ce = bce_sum if reduction == "sum" else bce_sum / jnp.float32(N * C)
    ce_arr = jnp.reshape(ce.astype(jnp.float32), (1, 1))

    # Pass 2: recompute focal_weight (compute is free, kernel is HBM-bound),
    # scale by the SMEM scalar CE in f32, and write the final output directly.
    return pl.pallas_call(
        functools.partial(_focal_scale_kernel, gamma=float(gamma)),
        out_shape=jax.ShapeDtypeStruct((N, C), inputs.dtype),
        grid=grid,
        in_specs=[pl.BlockSpec(memory_space=pltpu.MemorySpace.SMEM), tile_spec],
        out_specs=tile_spec,
        compiler_params=cparams,
        cost_estimate=pl.CostEstimate(
            flops=10 * N * C, transcendentals=2 * N * C,
            bytes_accessed=2 * N * C * in_isz),
    )(ce_arr, inputs)


# ---------------------------------------------------------------------------
# Pure-JAX reference mirroring the PyTorch module
# ---------------------------------------------------------------------------
def _focal_loss_ref(inputs, targets, gamma=2.0, reduction="none"):
    x = inputs.astype(jnp.float32)
    t = targets.astype(jnp.float32)
    probs = jnp.clip(jax.nn.sigmoid(x), 1e-9, 1.0 - 1e-9)
    fw = (1.0 - probs) ** gamma
    bce = jnp.maximum(x, 0.0) - x * t + jnp.log1p(jnp.exp(-jnp.abs(x)))
    if reduction == "none":
        ce = bce
    elif reduction == "sum":
        ce = jnp.sum(bce)
    else:
        ce = jnp.mean(bce)
    return fw * ce


if __name__ == "__main__":
    key = jax.random.PRNGKey(0)
    ok = True

    # Main case: (N, C) = (32, 128) logits / binary targets, all reductions.
    # Extra case: ragged rows + non-multiple-of-128 C exercises the in-kernel
    # tail masking (no wrapper pads / slices anywhere).
    for (N, C) in ((32, 128), (13, 80)):
        k1, k2, key = jax.random.split(key, 3)
        inputs = jax.random.normal(k1, (N, C), dtype=jnp.float32) * 2.0
        targets = jax.random.bernoulli(k2, p=0.3, shape=(N, C)).astype(jnp.float32)
        for reduction in ("none", "mean", "sum"):
            out = focal_loss(inputs, targets, gamma=2.0, reduction=reduction)
            out = jax.block_until_ready(out)
            ref = _focal_loss_ref(inputs, targets, gamma=2.0, reduction=reduction)
            if not jnp.allclose(out, ref, rtol=1e-5, atol=1e-5):
                ok = False
                print(f"MISMATCH (N={N}, C={C}, {reduction}): max abs diff = "
                      f"{float(jnp.max(jnp.abs(out - ref)))}")

    if ok:
        print("KERNEL_OK")
</pallas_src>

<mosaic_0001>
module attributes {stable_mosaic.version = 11 : i64} {
  func.func @_focal_none_kernel(%arg0: i32, %arg1: memref<16x128xf32, #tpu.memory_space<vmem>>, %arg2: memref<16x128xf32, #tpu.memory_space<vmem>>, %arg3: memref<16x128xf32, #tpu.memory_space<vmem>>) attributes {dimension_semantics = [#tpu.dimension_semantics<parallel>], iteration_bounds = array<i64: 2>, scalar_prefetch = 0 : i64, scratch_operands = 0 : i64, tpu.core_type = #tpu.core_type<tc>, window_params = [{transform_indices = @transform_0, window_bounds = array<i64: 16, 128>}, {transform_indices = @transform_1, window_bounds = array<i64: 16, 128>}, {transform_indices = @transform_2, window_bounds = array<i64: 16, 128>}]} {
    %c0 = arith.constant 0 : index
    %c0_0 = arith.constant 0 : index
    %0 = vector.load %arg1[%c0, %c0_0] : memref<16x128xf32, #tpu.memory_space<vmem>>, vector<16x128xf32>
    %c0_1 = arith.constant 0 : index
    %c0_2 = arith.constant 0 : index
    %1 = vector.load %arg2[%c0_1, %c0_2] : memref<16x128xf32, #tpu.memory_space<vmem>>, vector<16x128xf32>
    %2 = math.absf %0 : vector<16x128xf32>
    %cst = arith.constant 0.000000e+00 : f32
    %3 = vector.broadcast %cst : f32 to vector<16x128xf32>
    %4 = arith.subf %3, %2 : vector<16x128xf32>
    %5 = math.exp %4 : vector<16x128xf32>
    %cst_3 = arith.constant 1.000000e+00 : f32
    %6 = vector.broadcast %cst_3 : f32 to vector<16x128xf32>
    %7 = arith.addf %6, %5 : vector<16x128xf32>
    %cst_4 = arith.constant 1.000000e+00 : f32
    %8 = vector.broadcast %cst_4 : f32 to vector<16x128xf32>
    %9 = arith.divf %8, %7 : vector<16x128xf32>
    %cst_5 = arith.constant 0.000000e+00 : f32
    %10 = vector.broadcast %cst_5 : f32 to vector<16x128xf32>
    %11 = arith.cmpf oge, %0, %10 : vector<16x128xf32>
    %12 = arith.mulf %5, %9 : vector<16x128xf32>
    %13 = arith.select %11, %9, %12 : vector<16x128xi1>, vector<16x128xf32>
    %cst_6 = arith.constant 9.99999971E-10 : f32
    %cst_7 = arith.constant 1.000000e+00 : f32
    %14 = vector.broadcast %cst_6 : f32 to vector<16x128xf32>
    %15 = arith.maximumf %14, %13 : vector<16x128xf32>
    %16 = vector.broadcast %cst_7 : f32 to vector<16x128xf32>
    %17 = arith.minimumf %16, %15 : vector<16x128xf32>
    %cst_8 = arith.constant 1.000000e+00 : f32
    %18 = vector.broadcast %cst_8 : f32 to vector<16x128xf32>
    %19 = arith.subf %18, %17 : vector<16x128xf32>
    %20 = arith.mulf %19, %19 : vector<16x128xf32>
    %cst_9 = arith.constant 0.000000e+00 : f32
    %21 = vector.broadcast %cst_9 : f32 to vector<16x128xf32>
    %22 = arith.maximumf %0, %21 : vector<16x128xf32>
    %23 = arith.mulf %0, %1 : vector<16x128xf32>
    %24 = arith.subf %22, %23 : vector<16x128xf32>
    %25 = math.log1p %5 : vector<16x128xf32>
    %26 = arith.addf %24, %25 : vector<16x128xf32>
    %27 = arith.mulf %20, %26 : vector<16x128xf32>
    %c0_10 = arith.constant 0 : index
    %c0_11 = arith.constant 0 : index
    %28 = vector.load %arg3[%c0_10, %c0_11] : memref<16x128xf32, #tpu.memory_space<vmem>>, vector<16x128xf32>
    tpu.vector_store %arg3[%c0_10, %c0_11], %27 {strides = array<i32>} : memref<16x128xf32, #tpu.memory_space<vmem>>, vector<16x128xf32>,
    return
  }
  func.func @transform_0(%arg0: i32) -> (i32, i32) {
    %c0_i32 = arith.constant 0 : i32
    %c0_i32_0 = arith.constant 0 : i32
    return %arg0, %c0_i32 : i32, i32
  }
  func.func @transform_1(%arg0: i32) -> (i32, i32) {
    %c0_i32 = arith.constant 0 : i32
    %c0_i32_0 = arith.constant 0 : i32
    return %arg0, %c0_i32 : i32, i32
  }
  func.func @transform_2(%arg0: i32) -> (i32, i32) {
    %c0_i32 = arith.constant 0 : i32
    %c0_i32_0 = arith.constant 0 : i32
    return %arg0, %c0_i32 : i32, i32
  }
}

</mosaic_0001>

<llo_original>
// kernel: tpu_custom_call.1
$region0: #{tpu_custom_call.1}
  #allocation0 [shape = 'u32[]', space=smem, size = 0x4, offset = 0x4, fixed_abs, tag = 'smem constant byte address 0x4 - core index']
  #allocation1 [shape = 'u32[144,128]{1,0:T(1,128)}', space=vmem, size = 0x12000, scoped, tag = 'internal scratch']
  %s0 = inlined_call_operand.hbm [shape: f32[32,128], index: 0, kind: input, shape index: {}]
  %s1 = inlined_call_operand.hbm [shape: f32[32,128], index: 1, kind: input, shape index: {}]
  %s2 = inlined_call_operand.hbm [shape: f32[32,128], index: 2, kind: output, shape index: {}]
  %s3 = sld [smem:[#allocation0]]
  $region49: #{tpu_custom_call.1} parent=0
    _
  %s5 = ssub.s32 1, %s3
  %s6 = scalar_select 0, %s5, %s3
  $region1: #{tpu_custom_call.1} parent=0
    #allocation2 [shape = 'u8[16384]{0}', space=vmem, size = 0x4000, scoped, tag = 'input window, operand 0']
    #allocation3 [shape = 's32[2]{0}', space=sflag, size = 0x8, scoped, tag = 'scoped memory for tpu_custom_call.1']
    #allocation4 [shape = 's32[2]{0}', space=sflag, size = 0x8, scoped, tag = 'scoped memory for tpu_custom_call.1']
    #allocation5 [shape = 'u8[16384]{0}', space=vmem, size = 0x4000, scoped, tag = 'input window, operand 1']
    #allocation6 [shape = 's32[2]{0}', space=sflag, size = 0x8, scoped, tag = 'scoped memory for tpu_custom_call.1']
    #allocation7 [shape = 'u8[16384]{0}', space=vmem, size = 0x4000, scoped, tag = 'output window, operand 0']
    %7 = vsyncpa [#allocation3], 0
    %s8 = scalar_lea.sflag [#allocation3], 1
    %9 = vsyncpa %s8, 0
    %10 = vsyncpa [#allocation6], 0
    %s11 = scalar_lea.sflag [#allocation6], 1
    %12 = vsyncpa %s11, 0
    %13 = vsyncpa [#allocation4], 0
    %s14 = scalar_lea.sflag [#allocation4], 1
    %15 = vsyncpa %s14, 0
    loop: start=0, step=1, limit=4
    $region2: #{tpu_custom_call.1} parent=1 // loop_pre_header
      _
    $region3: #{tpu_custom_call.1} parent=1 // loop_header
      %s17 = sphi 0, %s21
      %p18 = scmp.ge.s32.totalorder %s17, 4
      %s27 = sphi 0, %s29
      %s30 = sphi 0, %s27
      %s31 = sphi 0, %s30
      %s47 = sphi 0, %s31
      %s53 = sphi 0, %s55
      %s56 = sphi 0, %s53
      %s57 = sphi 0, %s56
      %s73 = sphi 0, %s57
      %s79 = sphi 0, %s81
      %s82 = sphi 0, %s79
      %s83 = sphi 0, %s82
      %s99 = sphi 0, %s83
    $region4: #{tpu_custom_call.1} parent=1 // loop_header_branch
      %20 = sbr.rel (%p18) target = $region8
    $region5: #{tpu_custom_call.1} parent=1 // loop_body
      %s22 = ssub.s32 %s17, 1
      %s23 = ssub.s32 %s17, 2
      %s24 = sadd.s32 %s17, 1
      %s25 = ssub.s32 %s17, %s24
      %p26 = scmp.eq.s32.totalorder %s25, 0
      %s28 = sadd.s32 %s27, 1
      %s29 = scalar_select %p26, %s27, %s28
      %p32 = pneg %p26
      %p33 = scmp.eq.s32.totalorder %s17, 1
      %p34 = por %p32, %p33
      %p35 = scmp.ne.s32.totalorder %s27, %s30
      %p36 = scmp.eq.s32.totalorder %s17, 0
      %p37 = por %p35, %p36
      %p38 = scmp.ne.s32.totalorder %s27, %s30
      %p39 = scmp.eq.s32.totalorder %s22, 1
      %p40 = por %p38, %p39
      %p41 = scmp.ne.s32.totalorder %s30, %s31
      %p42 = scmp.eq.s32.totalorder %s22, 0
      %p43 = por %p41, %p42
      %p44 = scmp.ne.s32.totalorder %s30, %s31
      %p45 = scmp.eq.s32.totalorder %s23, 1
      %p46 = por %p44, %p45
      %p48 = scmp.ne.s32.totalorder %s31, %s47
      %p49 = scmp.eq.s32.totalorder %s23, 0
      %p50 = por %p48, %p49
      %s51 = ssub.s32 %s17, %s24
      %p52 = scmp.eq.s32.totalorder %s51, 0
      %s54 = sadd.s32 %s53, 1
      %s55 = scalar_select %p52, %s53, %s54
      %p58 = pneg %p52
      %p59 = scmp.eq.s32.totalorder %s17, 1
      %p60 = por %p58, %p59
      %p61 = scmp.ne.s32.totalorder %s53, %s56
      %p62 = scmp.eq.s32.totalorder %s17, 0
      %p63 = por %p61, %p62
      %p64 = scmp.ne.s32.totalorder %s53, %s56
      %p65 = scmp.eq.s32.totalorder %s22, 1
      %p66 = por %p64, %p65
      %p67 = scmp.ne.s32.totalorder %s56, %s57
      %p68 = scmp.eq.s32.totalorder %s22, 0
      %p69 = por %p67, %p68
      %p70 = scmp.ne.s32.totalorder %s56, %s57
      %p71 = scmp.eq.s32.totalorder %s23, 1
      %p72 = por %p70, %p71
      %p74 = scmp.ne.s32.totalorder %s57, %s73
      %p75 = scmp.eq.s32.totalorder %s23, 0
      %p76 = por %p74, %p75
      %s77 = ssub.s32 %s17, %s24
      %p78 = scmp.eq.s32.totalorder %s77, 0
      %s80 = sadd.s32 %s79, 1
      %s81 = scalar_select %p78, %s79, %s80
      %p84 = pneg %p78
      %p85 = scmp.eq.s32.totalorder %s17, 1
      %p86 = por %p84, %p85
      %p87 = scmp.ne.s32.totalorder %s79, %s82
      %p88 = scmp.eq.s32.totalorder %s17, 0
      %p89 = por %p87, %p88
      %p90 = scmp.ne.s32.totalorder %s79, %s82
      %p91 = scmp.eq.s32.totalorder %s22, 1
      %p92 = por %p90, %p91
      %p93 = scmp.ne.s32.totalorder %s82, %s83
      %p94 = scmp.eq.s32.totalorder %s22, 0
      %p95 = por %p93, %p94
      %p96 = scmp.ne.s32.totalorder %s82, %s83
      %p97 = scmp.eq.s32.totalorder %s23, 1
      %p98 = por %p96, %p97
      %p100 = scmp.ne.s32.totalorder %s83, %s99
      %p101 = scmp.eq.s32.totalorder %s23, 0
      %p102 = por %p100, %p101
      %p103 = scmp.le.s32.totalorder 1, %s17
      %p104 = scmp.lt.s32.totalorder %s17, 3
      %p105 = pnand %p103, %p104
      %p106 = pneg %p105
      // Predicated region
      $region9: #{tpu_custom_call.1} parent=5 // pred_check
        _
      $region10: #{tpu_custom_call.1} parent=5 // pred_check_branch
        %108 = sbr.rel (%p105) target = $region12
      $region11: #{tpu_custom_call.1} parent=5 // pred_region
        %s109 = ssub.s32 %s17, 1
      $region12: #{tpu_custom_call.1} parent=5 // pred_fallthru
        _
      %p110 = scmp.lt.s32.totalorder %s17, 2
      // Predicated region
      $region13: #{tpu_custom_call.1} parent=5 // pred_check
        %p111 = pneg %p110
      $region14: #{tpu_custom_call.1} parent=5 // pred_check_branch
        %113 = sbr.rel (%p111) target = $region16
      $region15: #{tpu_custom_call.1} parent=5 // pred_region
        // Predicated region
        $region17: #{tpu_custom_call.1} parent=15 // pred_check
          %p114 = pneg %p37
        $region18: #{tpu_custom_call.1} parent=15 // pred_check_branch
          %116 = sbr.rel (%p114) target = $region20
        $region19: #{tpu_custom_call.1} parent=15 // pred_region
          %s117 = sand.u32 %s27, 1
          %s118 = scalar_lea.sflag [#allocation3], %s117
          %s119 = sand.u32 %s27, 1
          %s120 = smul.addr %s119, 16
          %s121 = scalar_lea.vmem [#allocation2], %s120
          %s122 = smul.u32 2, %s17
          %s124 = ssub.s32 256, 256
          %125 = vsyncadd %s118, %s124
          %s126 = smul.addr %s122, 128
          %s127 = scalar_lea.hbm %s0, %s126
          %s128 = sshll.u32 %s121, 4
          %s129 = int_to_ptr.vmem [resolvable:$true] %s128
          %134 = dma.hbm_to_vmem [thread:$0]  %s127, 256, %s129, %s118, 128, 128, 8
        $region20: #{tpu_custom_call.1} parent=15 // pred_fallthru
          _
        // Predicated region
        $region21: #{tpu_custom_call.1} parent=15 // pred_check
          %p135 = pneg %p63
        $region22: #{tpu_custom_call.1} parent=15 // pred_check_branch
          %137 = sbr.rel (%p135) target = $region24
        $region23: #{tpu_custom_call.1} parent=15 // pred_region
          %s138 = sand.u32 %s53, 1
          %s139 = scalar_lea.sflag [#allocation6], %s138
          %s140 = sand.u32 %s53, 1
          %s141 = smul.addr %s140, 16
          %s142 = scalar_lea.vmem [#allocation5], %s141
          %s143 = smul.u32 2, %s17
          %s145 = ssub.s32 256, 256
          %146 = vsyncadd %s139, %s145
          %s147 = smul.addr %s143, 128
          %s148 = scalar_lea.hbm %s1, %s147
          %s149 = sshll.u32 %s142, 4
          %s150 = int_to_ptr.vmem [resolvable:$true] %s149
          %155 = dma.hbm_to_vmem [thread:$0]  %s148, 256, %s150, %s139, 128, 128, 8
        $region24: #{tpu_custom_call.1} parent=15 // pred_fallthru
          _
      $region16: #{tpu_custom_call.1} parent=5 // pred_fallthru
        _
      %p156 = scmp.le.s32.totalorder 1, %s17
      %p157 = scmp.lt.s32.totalorder %s17, 3
      %p158 = pnand %p156, %p157
      %p159 = pneg %p158
      // Predicated region
      $region25: #{tpu_custom_call.1} parent=5 // pred_check
        _
      $region26: #{tpu_custom_call.1} parent=5 // pred_check_branch
        %161 = sbr.rel (%p158) target = $region28
      $region27: #{tpu_custom_call.1} parent=5 // pred_region
        %s162 = ssub.s32 %s17, 1
        %s163 = sand.u32 %s30, 1
        %s164 = scalar_lea.sflag [#allocation3], %s163
        %s165 = sand.u32 %s30, 1
        %s166 = smul.addr %s165, 16
        %s167 = scalar_lea.vmem [#allocation2], %s166
        // Predicated region
        $region29: #{tpu_custom_call.1} parent=27 // pred_check
          %p168 = pneg %p43
        $region30: #{tpu_custom_call.1} parent=27 // pred_check_branch
          %170 = sbr.rel (%p168) target = $region32
        $region31: #{tpu_custom_call.1} parent=27 // pred_region
          %171 = dma.done %s164, 256
        $region32: #{tpu_custom_call.1} parent=27 // pred_fallthru
          _
        %s172 = sand.u32 %s56, 1
        %s173 = scalar_lea.sflag [#allocation6], %s172
        %s174 = sand.u32 %s56, 1
        %s175 = smul.addr %s174, 16
        %s176 = scalar_lea.vmem [#allocation5], %s175
        // Predicated region
        $region33: #{tpu_custom_call.1} parent=27 // pred_check
          %p177 = pneg %p69
        $region34: #{tpu_custom_call.1} parent=27 // pred_check_branch
          %179 = sbr.rel (%p177) target = $region36
        $region35: #{tpu_custom_call.1} parent=27 // pred_region
          %180 = dma.done %s173, 256
        $region36: #{tpu_custom_call.1} parent=27 // pred_fallthru
          _
        %s181 = sand.u32 %s30, 1
        %s182 = scalar_lea.sflag [#allocation3], %s181
        %s183 = sand.u32 %s30, 1
        %s184 = smul.addr %s183, 16
        %s185 = scalar_lea.vmem [#allocation2], %s184
        %p186 = pneg %p43
        %p187 = pneg %p40
        %s188 = sand.u32 %s56, 1
        %s189 = scalar_lea.sflag [#allocation6], %s188
        %s190 = sand.u32 %s56, 1
        %s191 = smul.addr %s190, 16
        %s192 = scalar_lea.vmem [#allocation5], %s191
        %p193 = pneg %p69
        %p194 = pneg %p66
        %p195 = pneg %p95
        %p196 = pneg %p92
        %s197 = sand.u32 %s82, 1
        %s198 = scalar_lea.sflag [#allocation4], %s197
        %s199 = sand.u32 %s82, 1
        %s200 = smul.addr %s199, 16
        %s201 = scalar_lea.vmem [#allocation7], %s200
        %s202 = smul.u32 2, %s22
        %s203 = smul.u32 2, %s22
        %s204 = smul.u32 2, %s22
        %v205 = vld [vmem:[%s167] sm:$0xff]
        %v206 = vld [vmem:[%s167 + $0x8] sm:$0xff]
        %v207 = vld [vmem:[%s176] sm:$0xff]
        %v208 = vld [vmem:[%s176 + $0x8] sm:$0xff]
        %v209 = vand.u32 2147483647, %v205
        %v210 = vand.u32 2147483647, %v206
        %v211 = vsub.f32 0.0, %v209
        %v212 = vsub.f32 0.0, %v210
        %v213 = vmul.f32 %v211, 1.442695
        %v214 = vpow.pop %v213
        %v215 = vmul.f32 %v212, 1.442695
        %v216 = vpow.pop %v215
        %v217 = vadd.f32 %v214, 1.0
        %v218 = vadd.f32 %v216, 1.0
        %v219 = vrcp.pop %v217
        %v220 = vmul.f32 1.0, %v219
        %v221 = vrcp.pop %v218
        %v222 = vmul.f32 1.0, %v221
        %vm223 = vcmp.ge.f32.partialorder %v205, 0.0
        %vm224 = vcmp.ge.f32.partialorder %v206, 0.0
        %v225 = vmul.f32 %v214, %v220
        %v226 = vmul.f32 %v216, %v222
        %v227 = vsel %vm223, %v220, %v225
        %v228 = vsel %vm224, %v222, %v226
        %v229 = vmax.f32 %v227, 1e-09
        %v230 = vmax.f32 %v228, 1e-09
        %v231 = vmin.f32 %v229, 1.0
        %v232 = vmin.f32 %v230, 1.0
        %v233 = vsub.f32 1.0, %v231
        %v234 = vsub.f32 1.0, %v232
        %v235 = vmul.f32 %v233, %v233
        %v236 = vmul.f32 %v234, %v234
        %v237 = vmax.f32 %v205, 0.0
        %v238 = vmax.f32 %v206, 0.0
        %v239 = vmul.f32 %v205, %v207
        %v240 = vmul.f32 %v206, %v208
        %v241 = vsub.f32 %v237, %v239
        %v242 = vsub.f32 %v238, %v240
        %v243 = vadd.f32 %v214, 1.0
        %v244 = vlog2.pop %v243
        %v245 = vmul.f32 %v244, 0.6931472
        %v246 = vmul.f32 -0.5, %v214
        %v247 = vadd.f32 %v246, 1.0
        %v248 = vmul.f32 %v247, %v214
        %v249 = vand.u32 2147483647, %v214
        %vm250 = vcmp.lt.f32.partialorder %v249, 0.0004427343
        %v251 = vsel %vm250, %v248, %v245
        %v252 = vadd.f32 %v216, 1.0
        %v253 = vlog2.pop %v252
        %v254 = vmul.f32 %v253, 0.6931472
        %v255 = vmul.f32 -0.5, %v216
        %v256 = vadd.f32 %v255, 1.0
        %v257 = vmul.f32 %v256, %v216
        %v258 = vand.u32 2147483647, %v216
        %vm259 = vcmp.lt.f32.partialorder %v258, 0.0004427343
        %v260 = vsel %vm259, %v257, %v254
        %v261 = vadd.f32 %v241, %v251
        %v262 = vadd.f32 %v242, %v260
        %v263 = vmul.f32 %v235, %v261
        %v264 = vmul.f32 %v236, %v262
        %265 = vst [vmem:[%s201] sm:$0xff] %v263
        %266 = vst [vmem:[%s201 + $0x8] sm:$0xff] %v264
        %s267 = sand.u32 %s82, 1
        %s268 = scalar_lea.sflag [#allocation4], %s267
        %s269 = sand.u32 %s82, 1
        %s270 = smul.addr %s269, 16
        %s271 = scalar_lea.vmem [#allocation7], %s270
        // Predicated region
        $region37: #{tpu_custom_call.1} parent=27 // pred_check
          %p272 = pneg %p92
        $region38: #{tpu_custom_call.1} parent=27 // pred_check_branch
          %274 = sbr.rel (%p272) target = $region40
        $region39: #{tpu_custom_call.1} parent=27 // pred_region
          %s275 = smul.u32 2, %s22
          %s277 = ssub.s32 256, 256
          %278 = vsyncadd %s268, %s277
          %s279 = smul.addr %s275, 128
          %s280 = scalar_lea.hbm %s2, %s279
          %s281 = sshll.u32 %s271, 4
          %s282 = int_to_ptr.vmem [resolvable:$true] %s281
          %287 = dma.vmem_to_hbm [thread:$0]  %s282, 256, %s280, %s268, 128, 128, 8
        $region40: #{tpu_custom_call.1} parent=27 // pred_fallthru
          _
      $region28: #{tpu_custom_call.1} parent=5 // pred_fallthru
        _
      %p288 = scmp.le.s32.totalorder 2, %s17
      // Predicated region
      $region41: #{tpu_custom_call.1} parent=5 // pred_check
        %p289 = pneg %p288
      $region42: #{tpu_custom_call.1} parent=5 // pred_check_branch
        %291 = sbr.rel (%p289) target = $region44
      $region43: #{tpu_custom_call.1} parent=5 // pred_region
        %s292 = ssub.s32 %s17, 2
        // Predicated region
        $region45: #{tpu_custom_call.1} parent=43 // pred_check
          %p293 = pneg %p98
        $region46: #{tpu_custom_call.1} parent=43 // pred_check_branch
          %295 = sbr.rel (%p293) target = $region48
        $region47: #{tpu_custom_call.1} parent=43 // pred_region
          %s296 = sand.u32 %s83, 1
          %s297 = scalar_lea.sflag [#allocation4], %s296
          %s298 = sand.u32 %s83, 1
          %s299 = smul.addr %s298, 16
          %s300 = scalar_lea.vmem [#allocation7], %s299
          %301 = dma.done %s297, 256
        $region48: #{tpu_custom_call.1} parent=43 // pred_fallthru
          _
      $region44: #{tpu_custom_call.1} parent=5 // pred_fallthru
        _
    $region6: #{tpu_custom_call.1} parent=1 // loop_footer
      %s21 = sadd.s32 1, %s17
    $region7: #{tpu_custom_call.1} parent=1 // loop_footer_branch
      %16 = sbr.rel target = $region3
    $region8: #{tpu_custom_call.1} parent=1 // loop_exit
      _
    %302 = vsyncpa [#allocation3], 1
    %s303 = scalar_lea.sflag [#allocation3], 1
    %304 = vsyncpa %s303, 1
    %305 = vsyncpa [#allocation6], 1
    %s306 = scalar_lea.sflag [#allocation6], 1
    %307 = vsyncpa %s306, 1
    %308 = vsyncpa [#allocation4], 1
    %s309 = scalar_lea.sflag [#allocation4], 1
    %310 = vsyncpa %s309, 1

</llo_original>
